<compile_context>
chip_gen: v5e
topology: v5e:2x2
jax: 0.10.0
libtpu: 0.0.40
codegen_flags: <defaults>
</compile_context>

<pallas_src>
import functools

import jax
import jax.numpy as jnp
from jax import lax
from jax.experimental import pallas as pl
from jax.experimental.pallas import tpu as pltpu

hidden_dim = 64
input_dim = 21
layer_dim = 1
output_dim = 1


def lstm_kernel(x_ref, wih_ref, whh_ref, b_ref, wfc_ref, bfc_ref, y_ref, *,
                T, BP, H):
    """x_ref: (T*BP, D) time-major, batch padded to BP=8 rows per step;
    wih_ref: (D, 4H); whh_ref: (H, 4H); b_ref: (1, 4H) = b_ih + b_hh;
    wfc_ref: (1, H); bfc_ref: (1, 1).  Gate column order is [i, f, o, g]
    (permuted in the wrapper).  Writes y broadcast lane-dense to (BP, 128)."""
    # Hoisted input projection for ALL timesteps: one batched MXU matmul,
    # off the serial critical path.
    x_proj = (
        jnp.dot(x_ref[...], wih_ref[...], preferred_element_type=jnp.float32)
        + b_ref[...]
    )                                                     # (T*BP, 4H)
    whh = whh_ref[...]                                    # (H, 4H)

    # h0 = c0 = zeros (matches torch.zeros(layer_dim, B, H) init).
    h = jnp.zeros((BP, H), jnp.float32)
    c = jnp.zeros((BP, H), jnp.float32)

    # T is small and static -> unrolled loop; only h @ W_hh^T stays per-step.
    for t in range(T):
        gates = x_proj[t * BP:(t + 1) * BP, :] + jnp.dot(
            h, whh, preferred_element_type=jnp.float32)   # (BP, 4H)
        # Three sigmoid gates in one contiguous 192-lane slab via tanh form.
        sig = 0.5 * jnp.tanh(0.5 * gates[:, :3 * H]) + 0.5
        i = sig[:, 0 * H:1 * H]
        f = sig[:, 1 * H:2 * H]
        o = sig[:, 2 * H:3 * H]
        g = jnp.tanh(gates[:, 3 * H:4 * H])
        c = f * c + i * g
        h = o * jnp.tanh(c)

    # Fused FC head (output_dim=1): VPU multiply + lane reduce; lane-dense store.
    y = jnp.sum(h * wfc_ref[...], axis=-1, keepdims=True) + bfc_ref[...]  # (BP, 1)
    y_ref[...] = jnp.broadcast_to(y, (BP, 128))


def lstm_model_forward(x_btd, params):
    """x_btd: (B, T, D_in) float32 (batch_first, like the PyTorch module)."""
    B, T, D = x_btd.shape
    H = hidden_dim
    BP = ((B + 7) // 8) * 8          # pad batch rows to 8-sublane granularity

    # Time-major, batch-padded (T, BP, D) -> (T*BP, D) rows.
    x_tbd = jnp.transpose(x_btd, (1, 0, 2))                    # (T, B, D)
    x_tbd = jnp.pad(x_tbd, ((0, 0), (0, BP - B), (0, 0)))      # (T, BP, D)
    x_rows = x_tbd.reshape(T * BP, D)

    # Permute fused gate columns from PyTorch's [i, f, g, o] to [i, f, o, g].
    perm = jnp.concatenate([
        jnp.arange(0 * H, 1 * H),
        jnp.arange(1 * H, 2 * H),
        jnp.arange(3 * H, 4 * H),
        jnp.arange(2 * H, 3 * H),
    ])
    wih_t = params["w_ih"].T[:, perm]                               # (D, 4H)
    whh_t = params["w_hh"].T[:, perm]                               # (H, 4H)
    bias = (params["b_ih"] + params["b_hh"])[perm].reshape(1, 4 * H)
    w_fc = params["w_fc"].reshape(1, H)
    b_fc = params["b_fc"].reshape(1, 1)

    kernel = functools.partial(lstm_kernel, T=T, BP=BP, H=H)

    y_pad = pl.pallas_call(
        kernel,
        out_shape=jax.ShapeDtypeStruct((BP, 128), jnp.float32),
        in_specs=[
            pl.BlockSpec(memory_space=pltpu.MemorySpace.VMEM),  # x rows (T*BP, D)
            pl.BlockSpec(memory_space=pltpu.MemorySpace.VMEM),  # W_ih^T
            pl.BlockSpec(memory_space=pltpu.MemorySpace.VMEM),  # W_hh^T
            pl.BlockSpec(memory_space=pltpu.MemorySpace.VMEM),  # bias
            pl.BlockSpec(memory_space=pltpu.MemorySpace.VMEM),  # w_fc
            pl.BlockSpec(memory_space=pltpu.MemorySpace.VMEM),  # b_fc
        ],
        out_specs=pl.BlockSpec(memory_space=pltpu.MemorySpace.VMEM),
    )(x_rows, wih_t, whh_t, bias, w_fc, b_fc)

    # All lanes of a row carry the same y; take real batch rows, first lane.
    return y_pad[:B, 0:1]


def init_params(key):
    """Deterministic init matching PyTorch shapes (U(-1/sqrt(H), 1/sqrt(H)))."""
    ks = jax.random.split(key, 6)
    bound = 1.0 / jnp.sqrt(jnp.float32(hidden_dim))
    u = lambda k, shape: jax.random.uniform(k, shape, jnp.float32, -bound, bound)
    return {
        "w_ih": u(ks[0], (4 * hidden_dim, input_dim)),   # lstm.weight_ih_l0
        "w_hh": u(ks[1], (4 * hidden_dim, hidden_dim)),  # lstm.weight_hh_l0
        "b_ih": u(ks[2], (4 * hidden_dim,)),             # lstm.bias_ih_l0
        "b_hh": u(ks[3], (4 * hidden_dim,)),             # lstm.bias_hh_l0
        "w_fc": u(ks[4], (output_dim, hidden_dim)),      # fc.weight
        "b_fc": u(ks[5], (output_dim,)),                 # fc.bias
    }


def reference_forward(x_btd, params):
    """Pure-JAX reference of the PyTorch LSTM forward (for correctness check)."""
    B = x_btd.shape[0]
    H = hidden_dim
    h0 = jnp.zeros((B, H), jnp.float32)
    c0 = jnp.zeros((B, H), jnp.float32)
    w_ih, w_hh = params["w_ih"], params["w_hh"]
    b = params["b_ih"] + params["b_hh"]
    hp = jax.lax.Precision.HIGHEST

    def step(carry, x_t):
        h, c = carry
        gates = (jnp.dot(x_t, w_ih.T, precision=hp)
                 + jnp.dot(h, w_hh.T, precision=hp) + b)
        i = jax.nn.sigmoid(gates[:, 0 * H:1 * H])
        f = jax.nn.sigmoid(gates[:, 1 * H:2 * H])
        g = jnp.tanh(gates[:, 2 * H:3 * H])
        o = jax.nn.sigmoid(gates[:, 3 * H:4 * H])
        c = f * c + i * g
        h = o * jnp.tanh(c)
        return (h, c), None

    x_tbd = jnp.transpose(x_btd, (1, 0, 2))
    (h_last, _), _ = lax.scan(step, (h0, c0), x_tbd)
    return h_last @ params["w_fc"].T + params["b_fc"]


if __name__ == "__main__":
    key = jax.random.PRNGKey(0)
    k_p, k_x = jax.random.split(key)

    B, T = 2, 8
    params = init_params(k_p)
    x = jax.random.normal(k_x, (B, T, input_dim), jnp.float32)

    out = lstm_model_forward(x, params)
    out = jax.block_until_ready(out)

    ref = reference_forward(x, params)
    assert out.shape == (B, output_dim)
    assert jnp.max(jnp.abs(out - ref)) < 1e-3, "mismatch vs reference"

    print("KERNEL_OK")
</pallas_src>

<mosaic_0001>
module attributes {stable_mosaic.version = 11 : i64} {
  func.func @lstm_kernel(%arg0: memref<64x21xf32, #tpu.memory_space<vmem>>, %arg1: memref<21x256xf32, #tpu.memory_space<vmem>>, %arg2: memref<64x256xf32, #tpu.memory_space<vmem>>, %arg3: memref<1x256xf32, #tpu.memory_space<vmem>>, %arg4: memref<1x64xf32, #tpu.memory_space<vmem>>, %arg5: memref<1x1xf32, #tpu.memory_space<vmem>>, %arg6: memref<8x128xf32, #tpu.memory_space<vmem>>) attributes {dimension_semantics = [], scalar_prefetch = 0 : i64, scratch_operands = 0 : i64, tpu.core_type = #tpu.core_type<tc>} {
    %c0 = arith.constant 0 : index
    %c0_0 = arith.constant 0 : index
    %0 = vector.load %arg0[%c0, %c0_0] : memref<64x21xf32, #tpu.memory_space<vmem>>, vector<64x21xf32>
    %c0_1 = arith.constant 0 : index
    %c0_2 = arith.constant 0 : index
    %1 = vector.load %arg1[%c0_1, %c0_2] : memref<21x256xf32, #tpu.memory_space<vmem>>, vector<21x256xf32>
    %cst = arith.constant dense<0.000000e+00> : vector<64x256xf32>
    %2 = tpu.matmul %0, %1, %cst {dimension_numbers = #tpu.dot_dimension_numbers<[1], [0], [0], [1], [0, 0, 1, 1], [], []>} : vector<64x21xf32>, vector<21x256xf32>, vector<64x256xf32> -> vector<64x256xf32>
    %c0_3 = arith.constant 0 : index
    %c0_4 = arith.constant 0 : index
    %3 = vector.load %arg3[%c0_3, %c0_4] : memref<1x256xf32, #tpu.memory_space<vmem>>, vector<1x256xf32>
    %4 = vector.broadcast %3 : vector<1x256xf32> to vector<64x256xf32>
    %5 = arith.addf %2, %4 : vector<64x256xf32>
    %c0_5 = arith.constant 0 : index
    %c0_6 = arith.constant 0 : index
    %6 = vector.load %arg2[%c0_5, %c0_6] : memref<64x256xf32, #tpu.memory_space<vmem>>, vector<64x256xf32>
    %cst_7 = arith.constant 0.000000e+00 : f32
    %7 = vector.broadcast %cst_7 : f32 to vector<8x64xf32>
    %cst_8 = arith.constant 0.000000e+00 : f32
    %8 = vector.broadcast %cst_8 : f32 to vector<8x64xf32>
    %9 = vector.extract_strided_slice %5 {offsets = [0, 0], sizes = [8, 256], strides = [1, 1]} : vector<64x256xf32> to vector<8x256xf32>
    %cst_9 = arith.constant dense<0.000000e+00> : vector<8x256xf32>
    %10 = tpu.matmul %7, %6, %cst_9 {dimension_numbers = #tpu.dot_dimension_numbers<[1], [0], [0], [1], [0, 0, 1, 1], [], []>} : vector<8x64xf32>, vector<64x256xf32>, vector<8x256xf32> -> vector<8x256xf32>
    %11 = arith.addf %9, %10 : vector<8x256xf32>
    %12 = vector.extract_strided_slice %11 {offsets = [0, 0], sizes = [8, 192], strides = [1, 1]} : vector<8x256xf32> to vector<8x192xf32>
    %cst_10 = arith.constant 5.000000e-01 : f32
    %13 = vector.broadcast %cst_10 : f32 to vector<8x192xf32>
    %14 = arith.mulf %13, %12 : vector<8x192xf32>
    %15 = math.tanh %14 : vector<8x192xf32>
    %cst_11 = arith.constant 5.000000e-01 : f32
    %16 = vector.broadcast %cst_11 : f32 to vector<8x192xf32>
    %17 = arith.mulf %16, %15 : vector<8x192xf32>
    %cst_12 = arith.constant 5.000000e-01 : f32
    %18 = vector.broadcast %cst_12 : f32 to vector<8x192xf32>
    %19 = arith.addf %17, %18 : vector<8x192xf32>
    %20 = vector.extract_strided_slice %19 {offsets = [0, 0], sizes = [8, 64], strides = [1, 1]} : vector<8x192xf32> to vector<8x64xf32>
    %21 = vector.extract_strided_slice %19 {offsets = [0, 64], sizes = [8, 64], strides = [1, 1]} : vector<8x192xf32> to vector<8x64xf32>
    %22 = vector.extract_strided_slice %19 {offsets = [0, 128], sizes = [8, 64], strides = [1, 1]} : vector<8x192xf32> to vector<8x64xf32>
    %23 = vector.extract_strided_slice %11 {offsets = [0, 192], sizes = [8, 64], strides = [1, 1]} : vector<8x256xf32> to vector<8x64xf32>
    %24 = math.tanh %23 : vector<8x64xf32>
    %25 = arith.mulf %21, %8 : vector<8x64xf32>
    %26 = arith.mulf %20, %24 : vector<8x64xf32>
    %27 = arith.addf %25, %26 : vector<8x64xf32>
    %28 = math.tanh %27 : vector<8x64xf32>
    %29 = arith.mulf %22, %28 : vector<8x64xf32>
    %30 = vector.extract_strided_slice %5 {offsets = [8, 0], sizes = [8, 256], strides = [1, 1]} : vector<64x256xf32> to vector<8x256xf32>
    %cst_13 = arith.constant dense<0.000000e+00> : vector<8x256xf32>
    %31 = tpu.matmul %29, %6, %cst_13 {dimension_numbers = #tpu.dot_dimension_numbers<[1], [0], [0], [1], [0, 0, 1, 1], [], []>} : vector<8x64xf32>, vector<64x256xf32>, vector<8x256xf32> -> vector<8x256xf32>
    %32 = arith.addf %30, %31 : vector<8x256xf32>
    %33 = vector.extract_strided_slice %32 {offsets = [0, 0], sizes = [8, 192], strides = [1, 1]} : vector<8x256xf32> to vector<8x192xf32>
    %cst_14 = arith.constant 5.000000e-01 : f32
    %34 = vector.broadcast %cst_14 : f32 to vector<8x192xf32>
    %35 = arith.mulf %34, %33 : vector<8x192xf32>
    %36 = math.tanh %35 : vector<8x192xf32>
    %cst_15 = arith.constant 5.000000e-01 : f32
    %37 = vector.broadcast %cst_15 : f32 to vector<8x192xf32>
    %38 = arith.mulf %37, %36 : vector<8x192xf32>
    %cst_16 = arith.constant 5.000000e-01 : f32
    %39 = vector.broadcast %cst_16 : f32 to vector<8x192xf32>
    %40 = arith.addf %38, %39 : vector<8x192xf32>
    %41 = vector.extract_strided_slice %40 {offsets = [0, 0], sizes = [8, 64], strides = [1, 1]} : vector<8x192xf32> to vector<8x64xf32>
    %42 = vector.extract_strided_slice %40 {offsets = [0, 64], sizes = [8, 64], strides = [1, 1]} : vector<8x192xf32> to vector<8x64xf32>
    %43 = vector.extract_strided_slice %40 {offsets = [0, 128], sizes = [8, 64], strides = [1, 1]} : vector<8x192xf32> to vector<8x64xf32>
    %44 = vector.extract_strided_slice %32 {offsets = [0, 192], sizes = [8, 64], strides = [1, 1]} : vector<8x256xf32> to vector<8x64xf32>
    %45 = math.tanh %44 : vector<8x64xf32>
    %46 = arith.mulf %42, %27 : vector<8x64xf32>
    %47 = arith.mulf %41, %45 : vector<8x64xf32>
    %48 = arith.addf %46, %47 : vector<8x64xf32>
    %49 = math.tanh %48 : vector<8x64xf32>
    %50 = arith.mulf %43, %49 : vector<8x64xf32>
    %51 = vector.extract_strided_slice %5 {offsets = [16, 0], sizes = [8, 256], strides = [1, 1]} : vector<64x256xf32> to vector<8x256xf32>
    %cst_17 = arith.constant dense<0.000000e+00> : vector<8x256xf32>
    %52 = tpu.matmul %50, %6, %cst_17 {dimension_numbers = #tpu.dot_dimension_numbers<[1], [0], [0], [1], [0, 0, 1, 1], [], []>} : vector<8x64xf32>, vector<64x256xf32>, vector<8x256xf32> -> vector<8x256xf32>
    %53 = arith.addf %51, %52 : vector<8x256xf32>
    %54 = vector.extract_strided_slice %53 {offsets = [0, 0], sizes = [8, 192], strides = [1, 1]} : vector<8x256xf32> to vector<8x192xf32>
    %cst_18 = arith.constant 5.000000e-01 : f32
    %55 = vector.broadcast %cst_18 : f32 to vector<8x192xf32>
    %56 = arith.mulf %55, %54 : vector<8x192xf32>
    %57 = math.tanh %56 : vector<8x192xf32>
    %cst_19 = arith.constant 5.000000e-01 : f32
    %58 = vector.broadcast %cst_19 : f32 to vector<8x192xf32>
    %59 = arith.mulf %58, %57 : vector<8x192xf32>
    %cst_20 = arith.constant 5.000000e-01 : f32
    %60 = vector.broadcast %cst_20 : f32 to vector<8x192xf32>
    %61 = arith.addf %59, %60 : vector<8x192xf32>
    %62 = vector.extract_strided_slice %61 {offsets = [0, 0], sizes = [8, 64], strides = [1, 1]} : vector<8x192xf32> to vector<8x64xf32>
    %63 = vector.extract_strided_slice %61 {offsets = [0, 64], sizes = [8, 64], strides = [1, 1]} : vector<8x192xf32> to vector<8x64xf32>
    %64 = vector.extract_strided_slice %61 {offsets = [0, 128], sizes = [8, 64], strides = [1, 1]} : vector<8x192xf32> to vector<8x64xf32>
    %65 = vector.extract_strided_slice %53 {offsets = [0, 192], sizes = [8, 64], strides = [1, 1]} : vector<8x256xf32> to vector<8x64xf32>
    %66 = math.tanh %65 : vector<8x64xf32>
    %67 = arith.mulf %63, %48 : vector<8x64xf32>
    %68 = arith.mulf %62, %66 : vector<8x64xf32>
    %69 = arith.addf %67, %68 : vector<8x64xf32>
    %70 = math.tanh %69 : vector<8x64xf32>
    %71 = arith.mulf %64, %70 : vector<8x64xf32>
    %72 = vector.extract_strided_slice %5 {offsets = [24, 0], sizes = [8, 256], strides = [1, 1]} : vector<64x256xf32> to vector<8x256xf32>
    %cst_21 = arith.constant dense<0.000000e+00> : vector<8x256xf32>
    %73 = tpu.matmul %71, %6, %cst_21 {dimension_numbers = #tpu.dot_dimension_numbers<[1], [0], [0], [1], [0, 0, 1, 1], [], []>} : vector<8x64xf32>, vector<64x256xf32>, vector<8x256xf32> -> vector<8x256xf32>
    %74 = arith.addf %72, %73 : vector<8x256xf32>
    %75 = vector.extract_strided_slice %74 {offsets = [0, 0], sizes = [8, 192], strides = [1, 1]} : vector<8x256xf32> to vector<8x192xf32>
    %cst_22 = arith.constant 5.000000e-01 : f32
    %76 = vector.broadcast %cst_22 : f32 to vector<8x192xf32>
    %77 = arith.mulf %76, %75 : vector<8x192xf32>
    %78 = math.tanh %77 : vector<8x192xf32>
    %cst_23 = arith.constant 5.000000e-01 : f32
    %79 = vector.broadcast %cst_23 : f32 to vector<8x192xf32>
    %80 = arith.mulf %79, %78 : vector<8x192xf32>
    %cst_24 = arith.constant 5.000000e-01 : f32
    %81 = vector.broadcast %cst_24 : f32 to vector<8x192xf32>
    %82 = arith.addf %80, %81 : vector<8x192xf32>
    %83 = vector.extract_strided_slice %82 {offsets = [0, 0], sizes = [8, 64], strides = [1, 1]} : vector<8x192xf32> to vector<8x64xf32>
    %84 = vector.extract_strided_slice %82 {offsets = [0, 64], sizes = [8, 64], strides = [1, 1]} : vector<8x192xf32> to vector<8x64xf32>
    %85 = vector.extract_strided_slice %82 {offsets = [0, 128], sizes = [8, 64], strides = [1, 1]} : vector<8x192xf32> to vector<8x64xf32>
    %86 = vector.extract_strided_slice %74 {offsets = [0, 192], sizes = [8, 64], strides = [1, 1]} : vector<8x256xf32> to vector<8x64xf32>
    %87 = math.tanh %86 : vector<8x64xf32>
    %88 = arith.mulf %84, %69 : vector<8x64xf32>
    %89 = arith.mulf %83, %87 : vector<8x64xf32>
    %90 = arith.addf %88, %89 : vector<8x64xf32>
    %91 = math.tanh %90 : vector<8x64xf32>
    %92 = arith.mulf %85, %91 : vector<8x64xf32>
    %93 = vector.extract_strided_slice %5 {offsets = [32, 0], sizes = [8, 256], strides = [1, 1]} : vector<64x256xf32> to vector<8x256xf32>
    %cst_25 = arith.constant dense<0.000000e+00> : vector<8x256xf32>
    %94 = tpu.matmul %92, %6, %cst_25 {dimension_numbers = #tpu.dot_dimension_numbers<[1], [0], [0], [1], [0, 0, 1, 1], [], []>} : vector<8x64xf32>, vector<64x256xf32>, vector<8x256xf32> -> vector<8x256xf32>
    %95 = arith.addf %93, %94 : vector<8x256xf32>
    %96 = vector.extract_strided_slice %95 {offsets = [0, 0], sizes = [8, 192], strides = [1, 1]} : vector<8x256xf32> to vector<8x192xf32>
    %cst_26 = arith.constant 5.000000e-01 : f32
    %97 = vector.broadcast %cst_26 : f32 to vector<8x192xf32>
    %98 = arith.mulf %97, %96 : vector<8x192xf32>
    %99 = math.tanh %98 : vector<8x192xf32>
    %cst_27 = arith.constant 5.000000e-01 : f32
    %100 = vector.broadcast %cst_27 : f32 to vector<8x192xf32>
    %101 = arith.mulf %100, %99 : vector<8x192xf32>
    %cst_28 = arith.constant 5.000000e-01 : f32
    %102 = vector.broadcast %cst_28 : f32 to vector<8x192xf32>
    %103 = arith.addf %101, %102 : vector<8x192xf32>
    %104 = vector.extract_strided_slice %103 {offsets = [0, 0], sizes = [8, 64], strides = [1, 1]} : vector<8x192xf32> to vector<8x64xf32>
    %105 = vector.extract_strided_slice %103 {offsets = [0, 64], sizes = [8, 64], strides = [1, 1]} : vector<8x192xf32> to vector<8x64xf32>
    %106 = vector.extract_strided_slice %103 {offsets = [0, 128], sizes = [8, 64], strides = [1, 1]} : vector<8x192xf32> to vector<8x64xf32>
    %107 = vector.extract_strided_slice %95 {offsets = [0, 192], sizes = [8, 64], strides = [1, 1]} : vector<8x256xf32> to vector<8x64xf32>
    %108 = math.tanh %107 : vector<8x64xf32>
    %109 = arith.mulf %105, %90 : vector<8x64xf32>
    %110 = arith.mulf %104, %108 : vector<8x64xf32>
    %111 = arith.addf %109, %110 : vector<8x64xf32>
    %112 = math.tanh %111 : vector<8x64xf32>
    %113 = arith.mulf %106, %112 : vector<8x64xf32>
    %114 = vector.extract_strided_slice %5 {offsets = [40, 0], sizes = [8, 256], strides = [1, 1]} : vector<64x256xf32> to vector<8x256xf32>
    %cst_29 = arith.constant dense<0.000000e+00> : vector<8x256xf32>
    %115 = tpu.matmul %113, %6, %cst_29 {dimension_numbers = #tpu.dot_dimension_numbers<[1], [0], [0], [1], [0, 0, 1, 1], [], []>} : vector<8x64xf32>, vector<64x256xf32>, vector<8x256xf32> -> vector<8x256xf32>
    %116 = arith.addf %114, %115 : vector<8x256xf32>
    %117 = vector.extract_strided_slice %116 {offsets = [0, 0], sizes = [8, 192], strides = [1, 1]} : vector<8x256xf32> to vector<8x192xf32>
    %cst_30 = arith.constant 5.000000e-01 : f32
    %118 = vector.broadcast %cst_30 : f32 to vector<8x192xf32>
    %119 = arith.mulf %118, %117 : vector<8x192xf32>
    %120 = math.tanh %119 : vector<8x192xf32>
    %cst_31 = arith.constant 5.000000e-01 : f32
    %121 = vector.broadcast %cst_31 : f32 to vector<8x192xf32>
    %122 = arith.mulf %121, %120 : vector<8x192xf32>
    %cst_32 = arith.constant 5.000000e-01 : f32
    %123 = vector.broadcast %cst_32 : f32 to vector<8x192xf32>
    %124 = arith.addf %122, %123 : vector<8x192xf32>
    %125 = vector.extract_strided_slice %124 {offsets = [0, 0], sizes = [8, 64], strides = [1, 1]} : vector<8x192xf32> to vector<8x64xf32>
    %126 = vector.extract_strided_slice %124 {offsets = [0, 64], sizes = [8, 64], strides = [1, 1]} : vector<8x192xf32> to vector<8x64xf32>
    %127 = vector.extract_strided_slice %124 {offsets = [0, 128], sizes = [8, 64], strides = [1, 1]} : vector<8x192xf32> to vector<8x64xf32>
    %128 = vector.extract_strided_slice %116 {offsets = [0, 192], sizes = [8, 64], strides = [1, 1]} : vector<8x256xf32> to vector<8x64xf32>
    %129 = math.tanh %128 : vector<8x64xf32>
    %130 = arith.mulf %126, %111 : vector<8x64xf32>
    %131 = arith.mulf %125, %129 : vector<8x64xf32>
    %132 = arith.addf %130, %131 : vector<8x64xf32>
    %133 = math.tanh %132 : vector<8x64xf32>
    %134 = arith.mulf %127, %133 : vector<8x64xf32>
    %135 = vector.extract_strided_slice %5 {offsets = [48, 0], sizes = [8, 256], strides = [1, 1]} : vector<64x256xf32> to vector<8x256xf32>
    %cst_33 = arith.constant dense<0.000000e+00> : vector<8x256xf32>
    %136 = tpu.matmul %134, %6, %cst_33 {dimension_numbers = #tpu.dot_dimension_numbers<[1], [0], [0], [1], [0, 0, 1, 1], [], []>} : vector<8x64xf32>, vector<64x256xf32>, vector<8x256xf32> -> vector<8x256xf32>
    %137 = arith.addf %135, %136 : vector<8x256xf32>
    %138 = vector.extract_strided_slice %137 {offsets = [0, 0], sizes = [8, 192], strides = [1, 1]} : vector<8x256xf32> to vector<8x192xf32>
    %cst_34 = arith.constant 5.000000e-01 : f32
    %139 = vector.broadcast %cst_34 : f32 to vector<8x192xf32>
    %140 = arith.mulf %139, %138 : vector<8x192xf32>
    %141 = math.tanh %140 : vector<8x192xf32>
    %cst_35 = arith.constant 5.000000e-01 : f32
    %142 = vector.broadcast %cst_35 : f32 to vector<8x192xf32>
    %143 = arith.mulf %142, %141 : vector<8x192xf32>
    %cst_36 = arith.constant 5.000000e-01 : f32
    %144 = vector.broadcast %cst_36 : f32 to vector<8x192xf32>
    %145 = arith.addf %143, %144 : vector<8x192xf32>
    %146 = vector.extract_strided_slice %145 {offsets = [0, 0], sizes = [8, 64], strides = [1, 1]} : vector<8x192xf32> to vector<8x64xf32>
    %147 = vector.extract_strided_slice %145 {offsets = [0, 64], sizes = [8, 64], strides = [1, 1]} : vector<8x192xf32> to vector<8x64xf32>
    %148 = vector.extract_strided_slice %145 {offsets = [0, 128], sizes = [8, 64], strides = [1, 1]} : vector<8x192xf32> to vector<8x64xf32>
    %149 = vector.extract_strided_slice %137 {offsets = [0, 192], sizes = [8, 64], strides = [1, 1]} : vector<8x256xf32> to vector<8x64xf32>
    %150 = math.tanh %149 : vector<8x64xf32>
    %151 = arith.mulf %147, %132 : vector<8x64xf32>
    %152 = arith.mulf %146, %150 : vector<8x64xf32>
    %153 = arith.addf %151, %152 : vector<8x64xf32>
    %154 = math.tanh %153 : vector<8x64xf32>
    %155 = arith.mulf %148, %154 : vector<8x64xf32>
    %156 = vector.extract_strided_slice %5 {offsets = [56, 0], sizes = [8, 256], strides = [1, 1]} : vector<64x256xf32> to vector<8x256xf32>
    %cst_37 = arith.constant dense<0.000000e+00> : vector<8x256xf32>
    %157 = tpu.matmul %155, %6, %cst_37 {dimension_numbers = #tpu.dot_dimension_numbers<[1], [0], [0], [1], [0, 0, 1, 1], [], []>} : vector<8x64xf32>, vector<64x256xf32>, vector<8x256xf32> -> vector<8x256xf32>
    %158 = arith.addf %156, %157 : vector<8x256xf32>
    %159 = vector.extract_strided_slice %158 {offsets = [0, 0], sizes = [8, 192], strides = [1, 1]} : vector<8x256xf32> to vector<8x192xf32>
    %cst_38 = arith.constant 5.000000e-01 : f32
    %160 = vector.broadcast %cst_38 : f32 to vector<8x192xf32>
    %161 = arith.mulf %160, %159 : vector<8x192xf32>
    %162 = math.tanh %161 : vector<8x192xf32>
    %cst_39 = arith.constant 5.000000e-01 : f32
    %163 = vector.broadcast %cst_39 : f32 to vector<8x192xf32>
    %164 = arith.mulf %163, %162 : vector<8x192xf32>
    %cst_40 = arith.constant 5.000000e-01 : f32
    %165 = vector.broadcast %cst_40 : f32 to vector<8x192xf32>
    %166 = arith.addf %164, %165 : vector<8x192xf32>
    %167 = vector.extract_strided_slice %166 {offsets = [0, 0], sizes = [8, 64], strides = [1, 1]} : vector<8x192xf32> to vector<8x64xf32>
    %168 = vector.extract_strided_slice %166 {offsets = [0, 64], sizes = [8, 64], strides = [1, 1]} : vector<8x192xf32> to vector<8x64xf32>
    %169 = vector.extract_strided_slice %166 {offsets = [0, 128], sizes = [8, 64], strides = [1, 1]} : vector<8x192xf32> to vector<8x64xf32>
    %170 = vector.extract_strided_slice %158 {offsets = [0, 192], sizes = [8, 64], strides = [1, 1]} : vector<8x256xf32> to vector<8x64xf32>
    %171 = math.tanh %170 : vector<8x64xf32>
    %172 = arith.mulf %168, %153 : vector<8x64xf32>
    %173 = arith.mulf %167, %171 : vector<8x64xf32>
    %174 = arith.addf %172, %173 : vector<8x64xf32>
    %175 = math.tanh %174 : vector<8x64xf32>
    %176 = arith.mulf %169, %175 : vector<8x64xf32>
    %c0_41 = arith.constant 0 : index
    %c0_42 = arith.constant 0 : index
    %177 = vector.load %arg4[%c0_41, %c0_42] : memref<1x64xf32, #tpu.memory_space<vmem>>, vector<1x64xf32>
    %178 = vector.broadcast %177 : vector<1x64xf32> to vector<8x64xf32>
    %179 = arith.mulf %176, %178 : vector<8x64xf32>
    %cst_43 = arith.constant dense<0.000000e+00> : vector<8xf32>
    %180 = vector.multi_reduction <add>, %179, %cst_43 [1] : vector<8x64xf32> to vector<8xf32>
    %181 = vector.shape_cast %180 : vector<8xf32> to vector<8x1xf32>
    %c0_44 = arith.constant 0 : index
    %c0_45 = arith.constant 0 : index
    %182 = vector.load %arg5[%c0_44, %c0_45] : memref<1x1xf32, #tpu.memory_space<vmem>>, vector<1x1xf32>
    %183 = vector.broadcast %182 : vector<1x1xf32> to vector<8x1xf32>
    %184 = arith.addf %181, %183 : vector<8x1xf32>
    %185 = vector.shape_cast %184 : vector<8x1xf32> to vector<8x1xf32>
    %186 = vector.broadcast %185 : vector<8x1xf32> to vector<8x128xf32>
    %c0_46 = arith.constant 0 : index
    %c0_47 = arith.constant 0 : index
    %187 = vector.load %arg6[%c0_46, %c0_47] : memref<8x128xf32, #tpu.memory_space<vmem>>, vector<8x128xf32>
    tpu.vector_store %arg6[%c0_46, %c0_47], %186 {strides = array<i32>} : memref<8x128xf32, #tpu.memory_space<vmem>>, vector<8x128xf32>,
    return
  }
}

</mosaic_0001>

<llo_original>
// kernel: tpu_custom_call.1
$region0: #{tpu_custom_call.1}
  #allocation0 [shape = 'u32[]', space=smem, size = 0x4, offset = 0x4, fixed_abs, tag = 'smem constant byte address 0x4 - core index']
  #allocation1 [shape = 'u32[72,128]{1,0:T(1,128)}', space=vmem, size = 0x9000, scoped, tag = 'internal scratch']
  #allocation2 [shape = 'f32[1,1]{1,0:T(1,128)S(1)}', space=vmem, size = 0x200, scoped, tag = 'scoped memory for tpu_custom_call.1']
  %s0 = inlined_call_operand.vmem [shape: f32[64,21], index: 0, kind: input, shape index: {}]
  %s1 = inlined_call_operand.vmem [shape: f32[21,256], index: 1, kind: input, shape index: {}]
  %s2 = inlined_call_operand.hbm [shape: f32[64,256], index: 2, kind: input, shape index: {}]
  %s3 = inlined_call_operand.vmem [shape: f32[1,256], index: 3, kind: input, shape index: {}]
  %s4 = inlined_call_operand.vmem [shape: f32[1,64], index: 4, kind: input, shape index: {}]
  %s5 = inlined_call_operand.<no memory space> [shape: f32[1,1], index: 5, kind: input, shape index: {}]
  %s6 = inlined_call_operand.hbm [shape: f32[8,128], index: 6, kind: output, shape index: {}]
  %s7 = sld [smem:[#allocation0]]
  $region38: #{tpu_custom_call.1} parent=0
    _
  %s9 = ssub.s32 1, %s7
  %s10 = scalar_select 0, %s9, %s7
  %v11 = vstv %s5
  %12 = vst [vmem:[#allocation2] sm:$0x1] %v11
  $region1: #{tpu_custom_call.1} parent=0
    #allocation3 [shape = 'u8[65536]{0}', space=vmem, size = 0x10000, scoped, tag = 'input window, operand 2, single buffered']
    #allocation4 [shape = 's32[1]{0}', space=sflag, size = 0x4, scoped, tag = 'scoped memory for tpu_custom_call.1']
    #allocation5 [shape = 's32[1]{0}', space=sflag, size = 0x4, scoped, tag = 'scoped memory for tpu_custom_call.1']
    #allocation6 [shape = 'u8[4096]{0}', space=vmem, size = 0x1000, scoped, tag = 'output window, operand 0, single buffered']
    %13 = vsyncpa [#allocation4], 0
    %14 = vsyncpa [#allocation5], 0
    // Predicated region
    $region2: #{tpu_custom_call.1} parent=1 // pred_check
      _
    $region3: #{tpu_custom_call.1} parent=1 // pred_check_branch
      %16 = sbr.rel (0) target = $region5
    $region4: #{tpu_custom_call.1} parent=1 // pred_region
      _
    $region5: #{tpu_custom_call.1} parent=1 // pred_fallthru
      _
    // Predicated region
    $region6: #{tpu_custom_call.1} parent=1 // pred_check
      _
    $region7: #{tpu_custom_call.1} parent=1 // pred_check_branch
      %18 = sbr.rel (0) target = $region9
    $region8: #{tpu_custom_call.1} parent=1 // pred_region
      _
    $region9: #{tpu_custom_call.1} parent=1 // pred_fallthru
      _
    // Predicated region
    $region10: #{tpu_custom_call.1} parent=1 // pred_check
      _
    $region11: #{tpu_custom_call.1} parent=1 // pred_check_branch
      %20 = sbr.rel (0) target = $region13
    $region12: #{tpu_custom_call.1} parent=1 // pred_region
      %22 = vsyncadd [#allocation4], 0
      %s23 = sshll.u32 %s2, 4
      %s24 = int_to_ptr.hbm [resolvable:$true] %s23
      %s25 = sshll.u32 [#allocation3], 4
      %s26 = int_to_ptr.vmem [resolvable:$true] %s25
      %31 = dma.hbm_to_vmem [thread:$0]  %s24, 2048, %s26, [#allocation4], 256, 256, 16
    $region13: #{tpu_custom_call.1} parent=1 // pred_fallthru
      _
    // Predicated region
    $region14: #{tpu_custom_call.1} parent=1 // pred_check
      _
    $region15: #{tpu_custom_call.1} parent=1 // pred_check_branch
      %33 = sbr.rel (0) target = $region17
    $region16: #{tpu_custom_call.1} parent=1 // pred_region
      _
    $region17: #{tpu_custom_call.1} parent=1 // pred_fallthru
      _
    // Predicated region
    $region18: #{tpu_custom_call.1} parent=1 // pred_check
      _
    $region19: #{tpu_custom_call.1} parent=1 // pred_check_branch
      %35 = sbr.rel (0) target = $region21
    $region20: #{tpu_custom_call.1} parent=1 // pred_region
      _
    $region21: #{tpu_custom_call.1} parent=1 // pred_fallthru
      _
    // Predicated region
    $region22: #{tpu_custom_call.1} parent=1 // pred_check
      _
    $region23: #{tpu_custom_call.1} parent=1 // pred_check_branch
      %37 = sbr.rel (0) target = $region25
    $region24: #{tpu_custom_call.1} parent=1 // pred_region
      _
    $region25: #{tpu_custom_call.1} parent=1 // pred_fallthru
      _
    // Predicated region
    $region26: #{tpu_custom_call.1} parent=1 // pred_check
      _
    $region27: #{tpu_custom_call.1} parent=1 // pred_check_branch
      %39 = sbr.rel (0) target = $region29
    $region28: #{tpu_custom_call.1} parent=1 // pred_region
      %41 = dma.done [#allocation4], 2048
    $region29: #{tpu_custom_call.1} parent=1 // pred_fallthru
      _
    %v42 = vld [vmem:[%s0] sm:$0xff]
    %v43 = vld [vmem:[%s0 + $0x8] sm:$0xff]
    %v44 = vld [vmem:[%s0 + $0x10] sm:$0xff]
    %v45 = vld [vmem:[%s0 + $0x18] sm:$0xff]
    %v46 = vld [vmem:[%s0 + $0x20] sm:$0xff]
    %v47 = vld [vmem:[%s0 + $0x28] sm:$0xff]
    %v48 = vld [vmem:[%s0 + $0x30] sm:$0xff]
    %v49 = vld [vmem:[%s0 + $0x38] sm:$0xff]
    %v50 = vld [vmem:[%s1] sm:$0xff]
    %v51 = vld [vmem:[%s1 + $0x8] sm:$0xff]
    %v52 = vld [vmem:[%s1 + $0x10] sm:$0xff]
    %v53 = vld [vmem:[%s1 + $0x18] sm:$0xff]
    %v54 = vld [vmem:[%s1 + $0x20] sm:$0x1f]
    %v55 = vld [vmem:[%s1 + $0x28] sm:$0x1f]
    %v56 = vld [vmem:[%s3] sm:$0x3]
    %v58 = vperm.slane %v56, 0
    %v59 = vperm.slane %v56, 1
    %vm62 = vcmask 171008
    %v64 = vsel %vm62, %v42, 0
    %v67 = vsel %vm62, %v43, 0
    %v70 = vsel %vm62, %v44, 0
    %v73 = vsel %vm62, %v45, 0
    %v76 = vsel %vm62, %v46, 0
    %v79 = vsel %vm62, %v47, 0
    %v82 = vsel %vm62, %v48, 0
    %v85 = vsel %vm62, %v49, 0
    %vm87 = vcmask 1044480
    %v89 = vsel %vm87, %v54, 0
    %v92 = vsel %vm87, %v55, 0
    %94 = vmatpush.msra.mxu0 0.0
    %95 = vmatpush.msra.mxu0 0.0
    %96 = vmatpush.msra.mxu0 0.0
    %97 = vmatpush.msra.mxu0 0.0
    %98 = vmatpush.msra.mxu0 0.0
    %99 = vmatpush.msra.mxu0 0.0
    %100 = vmatpush.msra.mxu0 0.0
    %101 = vmatpush.msra.mxu0 0.0
    %102 = vmatpush.msra.mxu0 0.0
    %103 = vmatpush.msra.mxu0 0.0
    %104 = vmatpush.msra.mxu0 0.0
    %105 = vmatpush.msra.mxu0 0.0
    %106 = vmatpush.msra.mxu0 0.0
    %107 = vmatpush.msra.mxu0 %v89
    %108 = vmatpush.msra.mxu0 %v52
    %109 = vmatpush.msra.mxu0 %v50
    %110 = vmatmul.f32.gmra.mxu0 %v64
    %v111 = vpop.f32.mrf.mxu0
    %v112 = vadd.f32 %v58, %v111
    %113 = vmatmul.f32.gmra.mxu0 %v67
    %v114 = vpop.f32.mrf.mxu0
    %v115 = vadd.f32 %v58, %v114
    %116 = vmatmul.f32.gmra.mxu0 %v70
    %v117 = vpop.f32.mrf.mxu0
    %v118 = vadd.f32 %v58, %v117
    %119 = vmatmul.f32.gmra.mxu0 %v73
    %v120 = vpop.f32.mrf.mxu0
    %v121 = vadd.f32 %v58, %v120
    %122 = vmatmul.f32.gmra.mxu0 %v76
    %v123 = vpop.f32.mrf.mxu0
    %v124 = vadd.f32 %v58, %v123
    %125 = vmatmul.f32.gmra.mxu0 %v79
    %v126 = vpop.f32.mrf.mxu0
    %v127 = vadd.f32 %v58, %v126
    %128 = vmatmul.f32.gmra.mxu0 %v82
    %v129 = vpop.f32.mrf.mxu0
    %v130 = vadd.f32 %v58, %v129
    %131 = vmatmul.f32.gmra.mxu0 %v85
    %v132 = vpop.f32.mrf.mxu0
    %v133 = vadd.f32 %v58, %v132
    %134 = vdwg.mxu0
    %135 = vmatpush.msra.mxu0 0.0
    %136 = vmatpush.msra.mxu0 0.0
    %137 = vmatpush.msra.mxu0 0.0
    %138 = vmatpush.msra.mxu0 0.0
    %139 = vmatpush.msra.mxu0 0.0
    %140 = vmatpush.msra.mxu0 0.0
    %141 = vmatpush.msra.mxu0 0.0
    %142 = vmatpush.msra.mxu0 0.0
    %143 = vmatpush.msra.mxu0 0.0
    %144 = vmatpush.msra.mxu0 0.0
    %145 = vmatpush.msra.mxu0 0.0
    %146 = vmatpush.msra.mxu0 0.0
    %147 = vmatpush.msra.mxu0 0.0
    %148 = vmatpush.msra.mxu0 %v92
    %149 = vmatpush.msra.mxu0 %v53
    %150 = vmatpush.msra.mxu0 %v51
    %151 = vmatmul.f32.gmra.mxu0 %v64
    %v152 = vpop.f32.mrf.mxu0
    %v153 = vadd.f32 %v59, %v152
    %154 = vmatmul.f32.gmra.mxu0 %v67
    %v155 = vpop.f32.mrf.mxu0
    %v156 = vadd.f32 %v59, %v155
    %157 = vmatmul.f32.gmra.mxu0 %v70
    %v158 = vpop.f32.mrf.mxu0
    %v159 = vadd.f32 %v59, %v158
    %160 = vmatmul.f32.gmra.mxu0 %v73
    %v161 = vpop.f32.mrf.mxu0
    %v162 = vadd.f32 %v59, %v161
    %163 = vmatmul.f32.gmra.mxu0 %v76
    %v164 = vpop.f32.mrf.mxu0
    %v165 = vadd.f32 %v59, %v164
    %166 = vmatmul.f32.gmra.mxu0 %v79
    %v167 = vpop.f32.mrf.mxu0
    %v168 = vadd.f32 %v59, %v167
    %169 = vmatmul.f32.gmra.mxu0 %v82
    %v170 = vpop.f32.mrf.mxu0
    %v171 = vadd.f32 %v59, %v170
    %172 = vmatmul.f32.gmra.mxu0 %v85
    %v173 = vpop.f32.mrf.mxu0
    %v174 = vadd.f32 %v59, %v173
    %175 = vdwg.mxu0
    %v176 = vld [vmem:[#allocation3] sm:$0xff]
    %v177 = vld [vmem:[#allocation3 + $0x8] sm:$0xff]
    %v178 = vld [vmem:[#allocation3 + $0x10] sm:$0xff]
    %v179 = vld [vmem:[#allocation3 + $0x18] sm:$0xff]
    %v180 = vld [vmem:[#allocation3 + $0x20] sm:$0xff]
    %v181 = vld [vmem:[#allocation3 + $0x28] sm:$0xff]
    %v182 = vld [vmem:[#allocation3 + $0x30] sm:$0xff]
    %v183 = vld [vmem:[#allocation3 + $0x38] sm:$0xff]
    %v184 = vld [vmem:[#allocation3 + $0x40] sm:$0xff]
    %v185 = vld [vmem:[#allocation3 + $0x48] sm:$0xff]
    %v186 = vld [vmem:[#allocation3 + $0x50] sm:$0xff]
    %v187 = vld [vmem:[#allocation3 + $0x58] sm:$0xff]
    %v188 = vld [vmem:[#allocation3 + $0x60] sm:$0xff]
    %v189 = vld [vmem:[#allocation3 + $0x68] sm:$0xff]
    %v190 = vld [vmem:[#allocation3 + $0x70] sm:$0xff]
    %v191 = vld [vmem:[#allocation3 + $0x78] sm:$0xff]
    %vm192 = vcmask 523264
    %v194 = vsel %vm192, 0.0, 0
    %196 = vmatpush.msra.mxu0 0.0
    %197 = vmatpush.msra.mxu0 0.0
    %198 = vmatpush.msra.mxu0 0.0
    %199 = vmatpush.msra.mxu0 0.0
    %200 = vmatpush.msra.mxu0 0.0
    %201 = vmatpush.msra.mxu0 0.0
    %202 = vmatpush.msra.mxu0 0.0
    %203 = vmatpush.msra.mxu0 0.0
    %204 = vmatpush.msra.mxu0 %v190
    %205 = vmatpush.msra.mxu0 %v188
    %206 = vmatpush.msra.mxu0 %v186
    %207 = vmatpush.msra.mxu0 %v184
    %208 = vmatpush.msra.mxu0 %v182
    %209 = vmatpush.msra.mxu0 %v180
    %210 = vmatpush.msra.mxu0 %v178
    %211 = vmatpush.msra.mxu0 %v176
    %212 = vmatmul.f32.gmra.mxu0 %v194
    %v213 = vpop.f32.mrf.mxu0
    %v214 = vadd.f32 0.0, %v213
    %215 = vdwg.mxu0
    %216 = vmatpush.msra.mxu0 0.0
    %217 = vmatpush.msra.mxu0 0.0
    %218 = vmatpush.msra.mxu0 0.0
    %219 = vmatpush.msra.mxu0 0.0
    %220 = vmatpush.msra.mxu0 0.0
    %221 = vmatpush.msra.mxu0 0.0
    %222 = vmatpush.msra.mxu0 0.0
    %223 = vmatpush.msra.mxu0 0.0
    %224 = vmatpush.msra.mxu0 %v191
    %225 = vmatpush.msra.mxu0 %v189
    %226 = vmatpush.msra.mxu0 %v187
    %227 = vmatpush.msra.mxu0 %v185
    %228 = vmatpush.msra.mxu0 %v183
    %229 = vmatpush.msra.mxu0 %v181
    %230 = vmatpush.msra.mxu0 %v179
    %231 = vmatpush.msra.mxu0 %v177
    %232 = vmatmul.f32.gmra.mxu0 %v194
    %v233 = vpop.f32.mrf.mxu0
    %v234 = vadd.f32 0.0, %v233
    %235 = vdwg.mxu0
    %v236 = vadd.f32 %v112, %v214
    %v237 = vadd.f32 %v153, %v234
    %v238 = vmul.f32 %v236, 0.5
    %v239 = vmul.f32 %v237, 0.5
    %v240 = vtanh.pop %v238
    %v241 = vtanh.pop %v239
    %v242 = vmul.f32 %v240, 0.5
    %v243 = vmul.f32 %v241, 0.5
    %v244 = vadd.f32 %v242, 0.5
    %v245 = vadd.f32 %v243, 0.5
    %v246 = vtanh.pop %v237
    %v247 = vmul.f32 %v244, 0.0
    %249 = vrot.lane.b32.xlu0 %v246, 64
    %v250 = vpop.permute.xlu0 %249
    %v252 = vmul.f32 %v244, %v250
    %254 = vrot.lane.b32.xlu0 %v252, 64
    %v255 = vpop.permute.xlu0 %254
    %v257 = vadd.f32 %v247, %v255
    %v258 = vtanh.pop %v257
    %260 = vrot.lane.b32.xlu0 %v258, 64
    %v261 = vpop.permute.xlu0 %260
    %v263 = vmul.f32 %v245, %v261
    %v265 = vsel %vm192, %v263, 0
    %267 = vmatpush.msra.mxu0 0.0
    %268 = vmatpush.msra.mxu0 0.0
    %269 = vmatpush.msra.mxu0 0.0
    %270 = vmatpush.msra.mxu0 0.0
    %271 = vmatpush.msra.mxu0 0.0
    %272 = vmatpush.msra.mxu0 0.0
    %273 = vmatpush.msra.mxu0 0.0
    %274 = vmatpush.msra.mxu0 0.0
    %275 = vmatpush.msra.mxu0 %v190
    %276 = vmatpush.msra.mxu0 %v188
    %277 = vmatpush.msra.mxu0 %v186
    %278 = vmatpush.msra.mxu0 %v184
    %279 = vmatpush.msra.mxu0 %v182
    %280 = vmatpush.msra.mxu0 %v180
    %281 = vmatpush.msra.mxu0 %v178
    %282 = vmatpush.msra.mxu0 %v176
    %283 = vmatmul.f32.gmra.mxu0 %v265
    %v284 = vpop.f32.mrf.mxu0
    %v285 = vadd.f32 0.0, %v284
    %286 = vdwg.mxu0
    %287 = vmatpush.msra.mxu0 0.0
    %288 = vmatpush.msra.mxu0 0.0
    %289 = vmatpush.msra.mxu0 0.0
    %290 = vmatpush.msra.mxu0 0.0
    %291 = vmatpush.msra.mxu0 0.0
    %292 = vmatpush.msra.mxu0 0.0
    %293 = vmatpush.msra.mxu0 0.0
    %294 = vmatpush.msra.mxu0 0.0
    %295 = vmatpush.msra.mxu0 %v191
    %296 = vmatpush.msra.mxu0 %v189
    %297 = vmatpush.msra.mxu0 %v187
    %298 = vmatpush.msra.mxu0 %v185
    %299 = vmatpush.msra.mxu0 %v183
    %300 = vmatpush.msra.mxu0 %v181
    %301 = vmatpush.msra.mxu0 %v179
    %302 = vmatpush.msra.mxu0 %v177
    %303 = vmatmul.f32.gmra.mxu0 %v265
    %v304 = vpop.f32.mrf.mxu0
    %v305 = vadd.f32 0.0, %v304
    %306 = vdwg.mxu0
    %v307 = vadd.f32 %v115, %v285
    %v308 = vadd.f32 %v156, %v305
    %v309 = vmul.f32 %v307, 0.5
    %v310 = vmul.f32 %v308, 0.5
    %v311 = vtanh.pop %v309
    %v312 = vtanh.pop %v310
    %v313 = vmul.f32 %v311, 0.5
    %v314 = vmul.f32 %v312, 0.5
    %v315 = vadd.f32 %v313, 0.5
    %v316 = vadd.f32 %v314, 0.5
    %v317 = vtanh.pop %v308
    %v318 = vmul.f32 %v315, %v257
    %320 = vrot.lane.b32.xlu0 %v317, 64
    %v321 = vpop.permute.xlu0 %320
    %v323 = vmul.f32 %v315, %v321
    %325 = vrot.lane.b32.xlu0 %v323, 64
    %v326 = vpop.permute.xlu0 %325
    %v328 = vadd.f32 %v318, %v326
    %v329 = vtanh.pop %v328
    %331 = vrot.lane.b32.xlu0 %v329, 64
    %v332 = vpop.permute.xlu0 %331
    %v334 = vmul.f32 %v316, %v332
    %v336 = vsel %vm192, %v334, 0
    %338 = vmatpush.msra.mxu0 0.0
    %339 = vmatpush.msra.mxu0 0.0
    %340 = vmatpush.msra.mxu0 0.0
    %341 = vmatpush.msra.mxu0 0.0
    %342 = vmatpush.msra.mxu0 0.0
    %343 = vmatpush.msra.mxu0 0.0
    %344 = vmatpush.msra.mxu0 0.0
    %345 = vmatpush.msra.mxu0 0.0
    %346 = vmatpush.msra.mxu0 %v190
    %347 = vmatpush.msra.mxu0 %v188
    %348 = vmatpush.msra.mxu0 %v186
    %349 = vmatpush.msra.mxu0 %v184
    %350 = vmatpush.msra.mxu0 %v182
    %351 = vmatpush.msra.mxu0 %v180
    %352 = vmatpush.msra.mxu0 %v178
    %353 = vmatpush.msra.mxu0 %v176
    %354 = vmatmul.f32.gmra.mxu0 %v336
    %v355 = vpop.f32.mrf.mxu0
    %v356 = vadd.f32 0.0, %v355
    %357 = vdwg.mxu0
    %358 = vmatpush.msra.mxu0 0.0
    %359 = vmatpush.msra.mxu0 0.0
    %360 = vmatpush.msra.mxu0 0.0
    %361 = vmatpush.msra.mxu0 0.0
    %362 = vmatpush.msra.mxu0 0.0
    %363 = vmatpush.msra.mxu0 0.0
    %364 = vmatpush.msra.mxu0 0.0
    %365 = vmatpush.msra.mxu0 0.0
    %366 = vmatpush.msra.mxu0 %v191
    %367 = vmatpush.msra.mxu0 %v189
    %368 = vmatpush.msra.mxu0 %v187
    %369 = vmatpush.msra.mxu0 %v185
    %370 = vmatpush.msra.mxu0 %v183
    %371 = vmatpush.msra.mxu0 %v181
    %372 = vmatpush.msra.mxu0 %v179
    %373 = vmatpush.msra.mxu0 %v177
    %374 = vmatmul.f32.gmra.mxu0 %v336
    %v375 = vpop.f32.mrf.mxu0
    %v376 = vadd.f32 0.0, %v375
    %377 = vdwg.mxu0
    %v378 = vadd.f32 %v118, %v356
    %v379 = vadd.f32 %v159, %v376
    %v380 = vmul.f32 %v378, 0.5
    %v381 = vmul.f32 %v379, 0.5
    %v382 = vtanh.pop %v380
    %v383 = vtanh.pop %v381
    %v384 = vmul.f32 %v382, 0.5
    %v385 = vmul.f32 %v383, 0.5
    %v386 = vadd.f32 %v384, 0.5
    %v387 = vadd.f32 %v385, 0.5
    %v388 = vtanh.pop %v379
    %v389 = vmul.f32 %v386, %v328
    %391 = vrot.lane.b32.xlu0 %v388, 64
    %v392 = vpop.permute.xlu0 %391
    %v394 = vmul.f32 %v386, %v392
    %396 = vrot.lane.b32.xlu0 %v394, 64
    %v397 = vpop.permute.xlu0 %396
    %v399 = vadd.f32 %v389, %v397
    %v400 = vtanh.pop %v399
    %402 = vrot.lane.b32.xlu0 %v400, 64
    %v403 = vpop.permute.xlu0 %402
    %v405 = vmul.f32 %v387, %v403
    %v407 = vsel %vm192, %v405, 0
    %409 = vmatpush.msra.mxu0 0.0
    %410 = vmatpush.msra.mxu0 0.0
    %411 = vmatpush.msra.mxu0 0.0
    %412 = vmatpush.msra.mxu0 0.0
    %413 = vmatpush.msra.mxu0 0.0
    %414 = vmatpush.msra.mxu0 0.0
    %415 = vmatpush.msra.mxu0 0.0
    %416 = vmatpush.msra.mxu0 0.0
    %417 = vmatpush.msra.mxu0 %v190
    %418 = vmatpush.msra.mxu0 %v188
    %419 = vmatpush.msra.mxu0 %v186
    %420 = vmatpush.msra.mxu0 %v184
    %421 = vmatpush.msra.mxu0 %v182
    %422 = vmatpush.msra.mxu0 %v180
    %423 = vmatpush.msra.mxu0 %v178
    %424 = vmatpush.msra.mxu0 %v176
    %425 = vmatmul.f32.gmra.mxu0 %v407
    %v426 = vpop.f32.mrf.mxu0
    %v427 = vadd.f32 0.0, %v426
    %428 = vdwg.mxu0
    %429 = vmatpush.msra.mxu0 0.0
    %430 = vmatpush.msra.mxu0 0.0
    %431 = vmatpush.msra.mxu0 0.0
    %432 = vmatpush.msra.mxu0 0.0
    %433 = vmatpush.msra.mxu0 0.0
    %434 = vmatpush.msra.mxu0 0.0
    %435 = vmatpush.msra.mxu0 0.0
    %436 = vmatpush.msra.mxu0 0.0
    %437 = vmatpush.msra.mxu0 %v191
    %438 = vmatpush.msra.mxu0 %v189
    %439 = vmatpush.msra.mxu0 %v187
    %440 = vmatpush.msra.mxu0 %v185
    %441 = vmatpush.msra.mxu0 %v183
    %442 = vmatpush.msra.mxu0 %v181
    %443 = vmatpush.msra.mxu0 %v179
    %444 = vmatpush.msra.mxu0 %v177
    %445 = vmatmul.f32.gmra.mxu0 %v407
    %v446 = vpop.f32.mrf.mxu0
    %v447 = vadd.f32 0.0, %v446
    %448 = vdwg.mxu0
    %v449 = vadd.f32 %v121, %v427
    %v450 = vadd.f32 %v162, %v447
    %v451 = vmul.f32 %v449, 0.5
    %v452 = vmul.f32 %v450, 0.5
    %v453 = vtanh.pop %v451
    %v454 = vtanh.pop %v452
    %v455 = vmul.f32 %v453, 0.5
    %v456 = vmul.f32 %v454, 0.5
    %v457 = vadd.f32 %v455, 0.5
    %v458 = vadd.f32 %v456, 0.5
    %v459 = vtanh.pop %v450
    %v460 = vmul.f32 %v457, %v399
    %462 = vrot.lane.b32.xlu0 %v459, 64
    %v463 = vpop.permute.xlu0 %462
    %v465 = vmul.f32 %v457, %v463
    %467 = vrot.lane.b32.xlu0 %v465, 64
    %v468 = vpop.permute.xlu0 %467
    %v470 = vadd.f32 %v460, %v468
    %v471 = vtanh.pop %v470
    %473 = vrot.lane.b32.xlu0 %v471, 64
    %v474 = vpop.permute.xlu0 %473
    %v476 = vmul.f32 %v458, %v474
    %v478 = vsel %vm192, %v476, 0
    %480 = vmatpush.msra.mxu0 0.0
    %481 = vmatpush.msra.mxu0 0.0
    %482 = vmatpush.msra.mxu0 0.0
    %483 = vmatpush.msra.mxu0 0.0
    %484 = vmatpush.msra.mxu0 0.0
    %485 = vmatpush.msra.mxu0 0.0
    %486 = vmatpush.msra.mxu0 0.0
    %487 = vmatpush.msra.mxu0 0.0
    %488 = vmatpush.msra.mxu0 %v190
    %489 = vmatpush.msra.mxu0 %v188
    %490 = vmatpush.msra.mxu0 %v186
    %491 = vmatpush.msra.mxu0 %v184
    %492 = vmatpush.msra.mxu0 %v182
    %493 = vmatpush.msra.mxu0 %v180
    %494 = vmatpush.msra.mxu0 %v178
    %495 = vmatpush.msra.mxu0 %v176
    %496 = vmatmul.f32.gmra.mxu0 %v478
    %v497 = vpop.f32.mrf.mxu0
    %v498 = vadd.f32 0.0, %v497
    %499 = vdwg.mxu0
    %500 = vmatpush.msra.mxu0 0.0
    %501 = vmatpush.msra.mxu0 0.0
    %502 = vmatpush.msra.mxu0 0.0
    %503 = vmatpush.msra.mxu0 0.0
    %504 = vmatpush.msra.mxu0 0.0
    %505 = vmatpush.msra.mxu0 0.0
    %506 = vmatpush.msra.mxu0 0.0
    %507 = vmatpush.msra.mxu0 0.0
    %508 = vmatpush.msra.mxu0 %v191
    %509 = vmatpush.msra.mxu0 %v189
    %510 = vmatpush.msra.mxu0 %v187
    %511 = vmatpush.msra.mxu0 %v185
    %512 = vmatpush.msra.mxu0 %v183
    %513 = vmatpush.msra.mxu0 %v181
    %514 = vmatpush.msra.mxu0 %v179
    %515 = vmatpush.msra.mxu0 %v177
    %516 = vmatmul.f32.gmra.mxu0 %v478
    %v517 = vpop.f32.mrf.mxu0
    %v518 = vadd.f32 0.0, %v517
    %519 = vdwg.mxu0
    %v520 = vadd.f32 %v124, %v498
    %v521 = vadd.f32 %v165, %v518
    %v522 = vmul.f32 %v520, 0.5
    %v523 = vmul.f32 %v521, 0.5
    %v524 = vtanh.pop %v522
    %v525 = vtanh.pop %v523
    %v526 = vmul.f32 %v524, 0.5
    %v527 = vmul.f32 %v525, 0.5
    %v528 = vadd.f32 %v526, 0.5
    %v529 = vadd.f32 %v527, 0.5
    %v530 = vtanh.pop %v521
    %v531 = vmul.f32 %v528, %v470
    %533 = vrot.lane.b32.xlu0 %v530, 64
    %v534 = vpop.permute.xlu0 %533
    %v536 = vmul.f32 %v528, %v534
    %538 = vrot.lane.b32.xlu0 %v536, 64
    %v539 = vpop.permute.xlu0 %538
    %v541 = vadd.f32 %v531, %v539
    %v542 = vtanh.pop %v541
    %544 = vrot.lane.b32.xlu0 %v542, 64
    %v545 = vpop.permute.xlu0 %544
    %v547 = vmul.f32 %v529, %v545
    %v549 = vsel %vm192, %v547, 0
    %551 = vmatpush.msra.mxu0 0.0
    %552 = vmatpush.msra.mxu0 0.0
    %553 = vmatpush.msra.mxu0 0.0
    %554 = vmatpush.msra.mxu0 0.0
    %555 = vmatpush.msra.mxu0 0.0
    %556 = vmatpush.msra.mxu0 0.0
    %557 = vmatpush.msra.mxu0 0.0
    %558 = vmatpush.msra.mxu0 0.0
    %559 = vmatpush.msra.mxu0 %v190
    %560 = vmatpush.msra.mxu0 %v188
    %561 = vmatpush.msra.mxu0 %v186
    %562 = vmatpush.msra.mxu0 %v184
    %563 = vmatpush.msra.mxu0 %v182
    %564 = vmatpush.msra.mxu0 %v180
    %565 = vmatpush.msra.mxu0 %v178
    %566 = vmatpush.msra.mxu0 %v176
    %567 = vmatmul.f32.gmra.mxu0 %v549
    %v568 = vpop.f32.mrf.mxu0
    %v569 = vadd.f32 0.0, %v568
    %570 = vdwg.mxu0
    %571 = vmatpush.msra.mxu0 0.0
    %572 = vmatpush.msra.mxu0 0.0
    %573 = vmatpush.msra.mxu0 0.0
    %574 = vmatpush.msra.mxu0 0.0
    %575 = vmatpush.msra.mxu0 0.0
    %576 = vmatpush.msra.mxu0 0.0
    %577 = vmatpush.msra.mxu0 0.0
    %578 = vmatpush.msra.mxu0 0.0
    %579 = vmatpush.msra.mxu0 %v191
    %580 = vmatpush.msra.mxu0 %v189
    %581 = vmatpush.msra.mxu0 %v187
    %582 = vmatpush.msra.mxu0 %v185
    %583 = vmatpush.msra.mxu0 %v183
    %584 = vmatpush.msra.mxu0 %v181
    %585 = vmatpush.msra.mxu0 %v179
    %586 = vmatpush.msra.mxu0 %v177
    %587 = vmatmul.f32.gmra.mxu0 %v549
    %v588 = vpop.f32.mrf.mxu0
    %v589 = vadd.f32 0.0, %v588
    %590 = vdwg.mxu0
    %v591 = vadd.f32 %v127, %v569
    %v592 = vadd.f32 %v168, %v589
    %v593 = vmul.f32 %v591, 0.5
    %v594 = vmul.f32 %v592, 0.5
    %v595 = vtanh.pop %v593
    %v596 = vtanh.pop %v594
    %v597 = vmul.f32 %v595, 0.5
    %v598 = vmul.f32 %v596, 0.5
    %v599 = vadd.f32 %v597, 0.5
    %v600 = vadd.f32 %v598, 0.5
    %v601 = vtanh.pop %v592
    %v602 = vmul.f32 %v599, %v541
    %604 = vrot.lane.b32.xlu0 %v601, 64
    %v605 = vpop.permute.xlu0 %604
    %v607 = vmul.f32 %v599, %v605
    %609 = vrot.lane.b32.xlu0 %v607, 64
    %v610 = vpop.permute.xlu0 %609
    %v612 = vadd.f32 %v602, %v610
    %v613 = vtanh.pop %v612
    %615 = vrot.lane.b32.xlu0 %v613, 64
    %v616 = vpop.permute.xlu0 %615
    %v618 = vmul.f32 %v600, %v616
    %v620 = vsel %vm192, %v618, 0
    %622 = vmatpush.msra.mxu0 0.0
    %623 = vmatpush.msra.mxu0 0.0
    %624 = vmatpush.msra.mxu0 0.0
    %625 = vmatpush.msra.mxu0 0.0
    %626 = vmatpush.msra.mxu0 0.0
    %627 = vmatpush.msra.mxu0 0.0
    %628 = vmatpush.msra.mxu0 0.0
    %629 = vmatpush.msra.mxu0 0.0
    %630 = vmatpush.msra.mxu0 %v190
    %631 = vmatpush.msra.mxu0 %v188
    %632 = vmatpush.msra.mxu0 %v186
    %633 = vmatpush.msra.mxu0 %v184
    %634 = vmatpush.msra.mxu0 %v182
    %635 = vmatpush.msra.mxu0 %v180
    %636 = vmatpush.msra.mxu0 %v178
    %637 = vmatpush.msra.mxu0 %v176
    %638 = vmatmul.f32.gmra.mxu0 %v620
    %v639 = vpop.f32.mrf.mxu0
    %v640 = vadd.f32 0.0, %v639
    %641 = vdwg.mxu0
    %642 = vmatpush.msra.mxu0 0.0
    %643 = vmatpush.msra.mxu0 0.0
    %644 = vmatpush.msra.mxu0 0.0
    %645 = vmatpush.msra.mxu0 0.0
    %646 = vmatpush.msra.mxu0 0.0
    %647 = vmatpush.msra.mxu0 0.0
    %648 = vmatpush.msra.mxu0 0.0
    %649 = vmatpush.msra.mxu0 0.0
    %650 = vmatpush.msra.mxu0 %v191
    %651 = vmatpush.msra.mxu0 %v189
    %652 = vmatpush.msra.mxu0 %v187
    %653 = vmatpush.msra.mxu0 %v185
    %654 = vmatpush.msra.mxu0 %v183
    %655 = vmatpush.msra.mxu0 %v181
    %656 = vmatpush.msra.mxu0 %v179
    %657 = vmatpush.msra.mxu0 %v177
    %658 = vmatmul.f32.gmra.mxu0 %v620
    %v659 = vpop.f32.mrf.mxu0
    %v660 = vadd.f32 0.0, %v659
    %661 = vdwg.mxu0
    %v662 = vadd.f32 %v130, %v640
    %v663 = vadd.f32 %v171, %v660
    %v664 = vmul.f32 %v662, 0.5
    %v665 = vmul.f32 %v663, 0.5
    %v666 = vtanh.pop %v664
    %v667 = vtanh.pop %v665
    %v668 = vmul.f32 %v666, 0.5
    %v669 = vmul.f32 %v667, 0.5
    %v670 = vadd.f32 %v668, 0.5
    %v671 = vadd.f32 %v669, 0.5
    %v672 = vtanh.pop %v663
    %v673 = vmul.f32 %v670, %v612
    %675 = vrot.lane.b32.xlu0 %v672, 64
    %v676 = vpop.permute.xlu0 %675
    %v678 = vmul.f32 %v670, %v676
    %680 = vrot.lane.b32.xlu0 %v678, 64
    %v681 = vpop.permute.xlu0 %680
    %v683 = vadd.f32 %v673, %v681
    %v684 = vtanh.pop %v683
    %686 = vrot.lane.b32.xlu0 %v684, 64
    %v687 = vpop.permute.xlu0 %686
    %v689 = vmul.f32 %v671, %v687
    %v691 = vsel %vm192, %v689, 0
    %693 = vmatpush.msra.mxu0 0.0
    %694 = vmatpush.msra.mxu0 0.0
    %695 = vmatpush.msra.mxu0 0.0
    %696 = vmatpush.msra.mxu0 0.0
    %697 = vmatpush.msra.mxu0 0.0
    %698 = vmatpush.msra.mxu0 0.0
    %699 = vmatpush.msra.mxu0 0.0
    %700 = vmatpush.msra.mxu0 0.0
    %701 = vmatpush.msra.mxu0 %v190
    %702 = vmatpush.msra.mxu0 %v188
    %703 = vmatpush.msra.mxu0 %v186
    %704 = vmatpush.msra.mxu0 %v184
    %705 = vmatpush.msra.mxu0 %v182
    %706 = vmatpush.msra.mxu0 %v180
    %707 = vmatpush.msra.mxu0 %v178
    %708 = vmatpush.msra.mxu0 %v176
    %709 = vmatmul.f32.gmra.mxu0 %v691
    %v710 = vpop.f32.mrf.mxu0
    %v711 = vadd.f32 0.0, %v710
    %712 = vdwg.mxu0
    %713 = vmatpush.msra.mxu0 0.0
    %714 = vmatpush.msra.mxu0 0.0
    %715 = vmatpush.msra.mxu0 0.0
    %716 = vmatpush.msra.mxu0 0.0
    %717 = vmatpush.msra.mxu0 0.0
    %718 = vmatpush.msra.mxu0 0.0
    %719 = vmatpush.msra.mxu0 0.0
    %720 = vmatpush.msra.mxu0 0.0
    %721 = vmatpush.msra.mxu0 %v191
    %722 = vmatpush.msra.mxu0 %v189
    %723 = vmatpush.msra.mxu0 %v187
    %724 = vmatpush.msra.mxu0 %v185
    %725 = vmatpush.msra.mxu0 %v183
    %726 = vmatpush.msra.mxu0 %v181
    %727 = vmatpush.msra.mxu0 %v179
    %728 = vmatpush.msra.mxu0 %v177
    %729 = vmatmul.f32.gmra.mxu0 %v691
    %v730 = vpop.f32.mrf.mxu0
    %v731 = vadd.f32 0.0, %v730
    %732 = vdwg.mxu0
    %v733 = vadd.f32 %v133, %v711
    %v734 = vadd.f32 %v174, %v731
    %v735 = vmul.f32 %v733, 0.5
    %v736 = vmul.f32 %v734, 0.5
    %v737 = vtanh.pop %v735
    %v738 = vtanh.pop %v736
    %v739 = vmul.f32 %v737, 0.5
    %v740 = vmul.f32 %v738, 0.5
    %v741 = vadd.f32 %v739, 0.5
    %v742 = vadd.f32 %v740, 0.5
    %v743 = vtanh.pop %v734
    %v744 = vmul.f32 %v741, %v683
    %746 = vrot.lane.b32.xlu0 %v743, 64
    %v747 = vpop.permute.xlu0 %746
    %v749 = vmul.f32 %v741, %v747
    %751 = vrot.lane.b32.xlu0 %v749, 64
    %v752 = vpop.permute.xlu0 %751
    %v754 = vadd.f32 %v744, %v752
    %v755 = vtanh.pop %v754
    %757 = vrot.lane.b32.xlu0 %v755, 64
    %v758 = vpop.permute.xlu0 %757
    %v760 = vmul.f32 %v742, %v758
    %v761 = vld [vmem:[%s4] sm:$0x1]
    %v763 = vperm.slane %v761, 0
    %v765 = vmul.f32 %v760, %v763
    %v766 = vsel %vm192, %v765, 0.0
    %767 = vadd.xlane.f32.xlu0 %v766
    %v768 = vpop.xlane.xlu0 %767
    %v769 = vld [vmem:[#allocation2] sm:$0x1]
    %v771 = vperm.slane %v769, 0
    %v773 = vadd.f32 %v768, %v771
    %775 = vset.pattern.permute.xlu0 0
    %776 = vperm.xlu0 %775, %v773
    %v777 = vpop.permute.xlu0 %776
    %779 = vst [vmem:[#allocation6] sm:$0xff] %v777
    // Predicated region
    $region30: #{tpu_custom_call.1} parent=1 // pred_check
      _
    $region31: #{tpu_custom_call.1} parent=1 // pred_check_branch
      %781 = sbr.rel (0) target = $region33
    $region32: #{tpu_custom_call.1} parent=1 // pred_region
      %783 = vsyncadd [#allocation5], 0
      %s785 = sshll.u32 [#allocation6], 4
      %s786 = int_to_ptr.vmem [resolvable:$true] %s785
      %s787 = sshll.u32 %s6, 4
      %s788 = int_to_ptr.hbm [resolvable:$true] %s787
      %790 = dma.vmem_to_hbm [thread:$0]  %s786, 128, %s788, [#allocation5]
    $region33: #{tpu_custom_call.1} parent=1 // pred_fallthru
      _
    // Predicated region
    $region34: #{tpu_custom_call.1} parent=1 // pred_check
      _
    $region35: #{tpu_custom_call.1} parent=1 // pred_check_branch
      %792 = sbr.rel (0) target = $region37
    $region36: #{tpu_custom_call.1} parent=1 // pred_region
      %794 = dma.done [#allocation5], 128
    $region37: #{tpu_custom_call.1} parent=1 // pred_fallthru
      _
    %795 = vsyncpa [#allocation4], 1
    %796 = vsyncpa [#allocation5], 1

</llo_original>
